<compile_context>
chip_gen: v6e
topology: v6e:2x2x1
jax: 0.10.0
libtpu: 0.0.40
codegen_flags: <defaults>
</compile_context>

<pallas_src>
import jax
import jax.numpy as jnp
from jax.experimental import pallas as pl
from jax.experimental.pallas import tpu as pltpu

_LANE = 128
_FEAT_PAD = 128    # padded width of cat([ent, att, v]) feature dim
_HID_PAD = 128     # padded width of the 25-unit MLP hidden dim


def _round_up(x, m):
    return (x + m - 1) // m * m


def _numeric_head_kernel(f_ref, a_ref, v_ref,
                         ent_t_ref, att_t_ref,
                         w1_t_ref, w1v_ref, b1_ref, w2_ref, b2_ref,
                         out_ref):
    """One row-tile of the numerical head, transposed so rows sit on lanes.

    Shapes seen by the kernel (T = TILE_N):
      f_ref, a_ref : (1, T) int32        entity / attribute ids
      v_ref        : (1, T) float32      numerical values
      ent_t_ref    : (FEAT_PAD, E_pad)   ent table^T at feature slots [0, n_hidden)
      att_t_ref    : (FEAT_PAD, A_pad)   att table^T at slots [n_hidden, n_hidden+node_dim)
      w1_t_ref     : (HID_PAD, FEAT_PAD) W1^T (ent|att columns), zero-padded
      w1v_ref      : (HID_PAD, 1)        W1 column that multiplies the scalar v
      b1_ref       : (HID_PAD, 1)
      w2_ref       : (HID_PAD, 1)
      b2_ref       : (1, 1)
      out_ref      : (1, T) float32      sigmoid probabilities (lane-dense store)
    """
    tile_n = out_ref.shape[-1]
    e_pad = ent_t_ref.shape[1]
    a_pad = att_t_ref.shape[1]

    f_row = f_ref[...]                       # (1, T) int32
    a_row = a_ref[...]                       # (1, T) int32
    v_row = v_ref[...]                       # (1, T) f32

    # Embedding gathers as one-hot MXU matmuls (transposed: row index on lanes).
    ent_oh = (jax.lax.broadcasted_iota(jnp.int32, (e_pad, tile_n), 0)
              == f_row).astype(jnp.float32)                      # (E_pad, T)
    att_oh = (jax.lax.broadcasted_iota(jnp.int32, (a_pad, tile_n), 0)
              == a_row).astype(jnp.float32)                      # (A_pad, T)

    # featT = cat([ent, att], -1)^T realized via slot-offset padded tables.
    feat_t = jnp.dot(ent_t_ref[...], ent_oh,
                     preferred_element_type=jnp.float32)         # (FEAT_PAD, T)
    feat_t = feat_t + jnp.dot(att_t_ref[...], att_oh,
                              preferred_element_type=jnp.float32)

    # Layer 1: single fused 128x128 matmul + value column + bias, then ReLU.
    h_t = jnp.dot(w1_t_ref[...], feat_t,
                  preferred_element_type=jnp.float32)            # (HID_PAD, T)
    h_t = h_t + w1v_ref[...] * v_row + b1_ref[...]
    h_t = jnp.maximum(h_t, 0.0)

    # Layer 2 (25 -> 1) on VPU/XLU: broadcast multiply + sublane reduce.
    logit = jnp.sum(h_t * w2_ref[...], axis=0, keepdims=True) + b2_ref[...]  # (1, T)
    out_ref[...] = jax.nn.sigmoid(logit)


def _prepare_kernel_params(params):
    """Pad / transpose parameters into the lane-dense layout the kernel expects."""
    ent_tab = params["ent_tab"].astype(jnp.float32)
    att_tab = params["att_tab"].astype(jnp.float32)
    n_ent, n_hidden = ent_tab.shape
    n_att, node_dim = att_tab.shape
    mlp_hidden = params["w1e"].shape[1]
    assert n_hidden + node_dim + 1 <= _FEAT_PAD
    assert mlp_hidden <= _HID_PAD

    e_pad = _round_up(n_ent, _LANE)
    a_pad = _round_up(n_att, _LANE)

    ent_t = jnp.zeros((_FEAT_PAD, e_pad), jnp.float32)
    ent_t = ent_t.at[:n_hidden, :n_ent].set(ent_tab.T)
    att_t = jnp.zeros((_FEAT_PAD, a_pad), jnp.float32)
    att_t = att_t.at[n_hidden:n_hidden + node_dim, :n_att].set(att_tab.T)

    w1_t = jnp.zeros((_HID_PAD, _FEAT_PAD), jnp.float32)
    w1_t = w1_t.at[:mlp_hidden, :n_hidden].set(params["w1e"].T)
    w1_t = w1_t.at[:mlp_hidden, n_hidden:n_hidden + node_dim].set(params["w1a"].T)

    w1v_c = jnp.zeros((_HID_PAD, 1), jnp.float32).at[:mlp_hidden, 0].set(params["w1v"][0])
    b1_c = jnp.zeros((_HID_PAD, 1), jnp.float32).at[:mlp_hidden, 0].set(params["b1"][0])
    w2_c = jnp.zeros((_HID_PAD, 1), jnp.float32).at[:mlp_hidden, 0].set(params["w2"][:, 0])
    b2 = params["b2"].reshape(1, 1).astype(jnp.float32)

    return dict(ent_t=ent_t, att_t=att_t, w1_t=w1_t,
                w1v_c=w1v_c, b1_c=b1_c, w2_c=w2_c, b2=b2)


def numerical_classification(f, a, v, params, *, tile_n=512):
    """Embedding gather + concat + MLP head (Linear->ReLU->Linear->Sigmoid)."""
    B, S = f.shape
    N = B * S
    kp = _prepare_kernel_params(params)

    n_pad_min = _round_up(N, _LANE)
    tile_n = max(_LANE, min(_round_up(tile_n, _LANE), n_pad_min))
    n_pad = _round_up(N, tile_n)
    num_tiles = n_pad // tile_n

    def pad_rows(x, dtype, fill):
        x = x.reshape(-1).astype(dtype)
        x = jnp.pad(x, (0, n_pad - N), constant_values=fill)
        return x.reshape(num_tiles, 1, tile_n)

    f3 = pad_rows(f, jnp.int32, 0)
    a3 = pad_rows(a, jnp.int32, 0)
    v3 = pad_rows(v, jnp.float32, 0.0)

    # Row-blocked, lane-dense specs for ids / values / output.
    row_spec = pl.BlockSpec((None, 1, tile_n), lambda i: (i, 0, 0))

    def full_spec(arr):
        nd = arr.ndim
        return pl.BlockSpec(arr.shape, lambda i, _nd=nd: (0,) * _nd)

    weight_args = (kp["ent_t"], kp["att_t"], kp["w1_t"],
                   kp["w1v_c"], kp["b1_c"], kp["w2_c"], kp["b2"])

    out = pl.pallas_call(
        _numeric_head_kernel,
        out_shape=jax.ShapeDtypeStruct((num_tiles, 1, tile_n), jnp.float32),
        grid=(num_tiles,),
        in_specs=[row_spec, row_spec, row_spec] + [full_spec(w) for w in weight_args],
        out_specs=row_spec,
        compiler_params=pltpu.CompilerParams(
            dimension_semantics=("parallel",)),
    )(f3, a3, v3, *weight_args)

    return out.reshape(n_pad)[:N].reshape(B, S, 1)


def init_params(key, n_entities, n_attributes, n_categories,
                n_hidden, node_dim, value_dim, mlp_hidden=25):
    ks = jax.random.split(key, 8)
    scale = 0.1
    params = {
        # ent_embeds is supplied externally in the torch code; materialized here.
        "ent_tab": scale * jax.random.normal(ks[0], (n_entities, n_hidden), jnp.float32),
        "att_tab": scale * jax.random.normal(ks[1], (n_attributes, node_dim), jnp.float32),
        # cate_embeds exists in __init__ but is unused by the numerical path.
        "cate_tab": scale * jax.random.normal(ks[2], (n_categories, value_dim), jnp.float32),
        # classification['numerical']: Linear(D,25) -> ReLU -> Linear(25,1) -> Sigmoid;
        # the first Linear is split along its input: [n_hidden | node_dim | 1].
        "w1e": scale * jax.random.normal(ks[3], (n_hidden, mlp_hidden), jnp.float32),
        "w1a": scale * jax.random.normal(ks[4], (node_dim, mlp_hidden), jnp.float32),
        "w1v": scale * jax.random.normal(ks[5], (1, mlp_hidden), jnp.float32),
        "b1": jnp.zeros((1, mlp_hidden), jnp.float32),
        "w2": scale * jax.random.normal(ks[6], (mlp_hidden, 1), jnp.float32),
        "b2": jnp.zeros((1, 1), jnp.float32),
    }
    return params


if __name__ == "__main__":
    key = jax.random.PRNGKey(0)
    B, S = 2, 8
    n_hidden, node_dim, value_dim = 32, 16, 8
    n_entities, n_attributes, n_categories = 20, 10, 6

    k_params, k_f, k_a, k_v = jax.random.split(key, 4)
    params = init_params(k_params, n_entities, n_attributes, n_categories,
                         n_hidden, node_dim, value_dim)

    # input['numerical'] = (f, a, v, s, n); s and n are unused by the forward compute.
    f = jax.random.randint(k_f, (B, S), 0, n_entities, dtype=jnp.int32)
    a = jax.random.randint(k_a, (B, S), 0, n_attributes, dtype=jnp.int32)
    v = jax.random.normal(k_v, (B, S, 1), jnp.float32)

    out = numerical_classification(f, a, v, params)
    jax.block_until_ready(out)

    # Plain-JAX reference.
    ent = params["ent_tab"][f]                 # (B, S, n_hidden)
    att = params["att_tab"][a]                 # (B, S, node_dim)
    feat = jnp.concatenate([ent, att, v], axis=2)
    w1 = jnp.concatenate([params["w1e"], params["w1a"], params["w1v"]], axis=0)
    ref = jax.nn.sigmoid(jnp.maximum(feat @ w1 + params["b1"], 0.0) @ params["w2"]
                         + params["b2"])
    assert out.shape == (B, S, 1)
    assert jnp.allclose(out, ref, atol=1e-5, rtol=1e-5), \
        float(jnp.max(jnp.abs(out - ref)))

    print("KERNEL_OK")
</pallas_src>

<mosaic_0001>
module attributes {stable_mosaic.version = 11 : i64} {
  func.func @_numeric_head_kernel(%arg0: i32, %arg1: memref<1x1x128xi32, #tpu.memory_space<vmem>>, %arg2: memref<1x1x128xi32, #tpu.memory_space<vmem>>, %arg3: memref<1x1x128xf32, #tpu.memory_space<vmem>>, %arg4: memref<128x128xf32, #tpu.memory_space<vmem>>, %arg5: memref<128x128xf32, #tpu.memory_space<vmem>>, %arg6: memref<128x128xf32, #tpu.memory_space<vmem>>, %arg7: memref<128x1xf32, #tpu.memory_space<vmem>>, %arg8: memref<128x1xf32, #tpu.memory_space<vmem>>, %arg9: memref<128x1xf32, #tpu.memory_space<vmem>>, %arg10: memref<1x1xf32, #tpu.memory_space<vmem>>, %arg11: memref<1x1x128xf32, #tpu.memory_space<vmem>>) attributes {dimension_semantics = [#tpu.dimension_semantics<parallel>], iteration_bounds = array<i64: 1>, scalar_prefetch = 0 : i64, scratch_operands = 0 : i64, tpu.core_type = #tpu.core_type<tc>, window_params = [{transform_indices = @transform_0, window_bounds = array<i64: 1, 1, 128>}, {transform_indices = @transform_1, window_bounds = array<i64: 1, 1, 128>}, {transform_indices = @transform_2, window_bounds = array<i64: 1, 1, 128>}, {pipeline_mode = #tpu.pipeline_mode<synchronous>, transform_indices = @transform_3, window_bounds = array<i64: 128, 128>}, {pipeline_mode = #tpu.pipeline_mode<synchronous>, transform_indices = @transform_4, window_bounds = array<i64: 128, 128>}, {pipeline_mode = #tpu.pipeline_mode<synchronous>, transform_indices = @transform_5, window_bounds = array<i64: 128, 128>}, {pipeline_mode = #tpu.pipeline_mode<synchronous>, transform_indices = @transform_6, window_bounds = array<i64: 128, 1>}, {pipeline_mode = #tpu.pipeline_mode<synchronous>, transform_indices = @transform_7, window_bounds = array<i64: 128, 1>}, {pipeline_mode = #tpu.pipeline_mode<synchronous>, transform_indices = @transform_8, window_bounds = array<i64: 128, 1>}, {pipeline_mode = #tpu.pipeline_mode<synchronous>, transform_indices = @transform_9, window_bounds = array<i64: 1, 1>}, {transform_indices = @transform_10, window_bounds = array<i64: 1, 1, 128>}]} {
    %c0 = arith.constant 0 : index
    %c0_0 = arith.constant 0 : index
    %c0_1 = arith.constant 0 : index
    %0 = vector.load %arg1[%c0, %c0_0, %c0_1] : memref<1x1x128xi32, #tpu.memory_space<vmem>>, vector<1x1x128xi32>
    %1 = vector.shape_cast %0 : vector<1x1x128xi32> to vector<1x128xi32>
    %c0_2 = arith.constant 0 : index
    %c0_3 = arith.constant 0 : index
    %c0_4 = arith.constant 0 : index
    %2 = vector.load %arg2[%c0_2, %c0_3, %c0_4] : memref<1x1x128xi32, #tpu.memory_space<vmem>>, vector<1x1x128xi32>
    %3 = vector.shape_cast %2 : vector<1x1x128xi32> to vector<1x128xi32>
    %c0_5 = arith.constant 0 : index
    %c0_6 = arith.constant 0 : index
    %c0_7 = arith.constant 0 : index
    %4 = vector.load %arg3[%c0_5, %c0_6, %c0_7] : memref<1x1x128xf32, #tpu.memory_space<vmem>>, vector<1x1x128xf32>
    %5 = vector.shape_cast %4 : vector<1x1x128xf32> to vector<1x128xf32>
    %6 = tpu.iota {dimensions = array<i32: 0>} : vector<128x128xi32>
    %7 = vector.broadcast %1 : vector<1x128xi32> to vector<128x128xi32>
    %8 = arith.cmpi eq, %6, %7 : vector<128x128xi32>
    %9 = arith.extui %8 : vector<128x128xi1> to vector<128x128xi32>
    %10 = arith.sitofp %9 : vector<128x128xi32> to vector<128x128xf32>
    %11 = tpu.iota {dimensions = array<i32: 0>} : vector<128x128xi32>
    %12 = vector.broadcast %3 : vector<1x128xi32> to vector<128x128xi32>
    %13 = arith.cmpi eq, %11, %12 : vector<128x128xi32>
    %14 = arith.extui %13 : vector<128x128xi1> to vector<128x128xi32>
    %15 = arith.sitofp %14 : vector<128x128xi32> to vector<128x128xf32>
    %c0_8 = arith.constant 0 : index
    %c0_9 = arith.constant 0 : index
    %16 = vector.load %arg4[%c0_8, %c0_9] : memref<128x128xf32, #tpu.memory_space<vmem>>, vector<128x128xf32>
    %cst = arith.constant dense<0.000000e+00> : vector<128x128xf32>
    %17 = tpu.matmul %16, %10, %cst {dimension_numbers = #tpu.dot_dimension_numbers<[1], [0], [0], [1], [0, 0, 1, 1], [], []>} : vector<128x128xf32>, vector<128x128xf32>, vector<128x128xf32> -> vector<128x128xf32>
    %c0_10 = arith.constant 0 : index
    %c0_11 = arith.constant 0 : index
    %18 = vector.load %arg5[%c0_10, %c0_11] : memref<128x128xf32, #tpu.memory_space<vmem>>, vector<128x128xf32>
    %cst_12 = arith.constant dense<0.000000e+00> : vector<128x128xf32>
    %19 = tpu.matmul %18, %15, %cst_12 {dimension_numbers = #tpu.dot_dimension_numbers<[1], [0], [0], [1], [0, 0, 1, 1], [], []>} : vector<128x128xf32>, vector<128x128xf32>, vector<128x128xf32> -> vector<128x128xf32>
    %20 = arith.addf %17, %19 : vector<128x128xf32>
    %c0_13 = arith.constant 0 : index
    %c0_14 = arith.constant 0 : index
    %21 = vector.load %arg6[%c0_13, %c0_14] : memref<128x128xf32, #tpu.memory_space<vmem>>, vector<128x128xf32>
    %cst_15 = arith.constant dense<0.000000e+00> : vector<128x128xf32>
    %22 = tpu.matmul %21, %20, %cst_15 {dimension_numbers = #tpu.dot_dimension_numbers<[1], [0], [0], [1], [0, 0, 1, 1], [], []>} : vector<128x128xf32>, vector<128x128xf32>, vector<128x128xf32> -> vector<128x128xf32>
    %c0_16 = arith.constant 0 : index
    %c0_17 = arith.constant 0 : index
    %23 = vector.load %arg7[%c0_16, %c0_17] : memref<128x1xf32, #tpu.memory_space<vmem>>, vector<128x1xf32>
    %24 = vector.broadcast %23 : vector<128x1xf32> to vector<128x128xf32>
    %25 = vector.broadcast %5 : vector<1x128xf32> to vector<128x128xf32>
    %26 = arith.mulf %24, %25 : vector<128x128xf32>
    %27 = arith.addf %22, %26 : vector<128x128xf32>
    %c0_18 = arith.constant 0 : index
    %c0_19 = arith.constant 0 : index
    %28 = vector.load %arg8[%c0_18, %c0_19] : memref<128x1xf32, #tpu.memory_space<vmem>>, vector<128x1xf32>
    %29 = vector.broadcast %28 : vector<128x1xf32> to vector<128x128xf32>
    %30 = arith.addf %27, %29 : vector<128x128xf32>
    %cst_20 = arith.constant 0.000000e+00 : f32
    %31 = vector.broadcast %cst_20 : f32 to vector<128x128xf32>
    %32 = arith.maximumf %30, %31 : vector<128x128xf32>
    %c0_21 = arith.constant 0 : index
    %c0_22 = arith.constant 0 : index
    %33 = vector.load %arg9[%c0_21, %c0_22] : memref<128x1xf32, #tpu.memory_space<vmem>>, vector<128x1xf32>
    %34 = vector.broadcast %33 : vector<128x1xf32> to vector<128x128xf32>
    %35 = arith.mulf %32, %34 : vector<128x128xf32>
    %cst_23 = arith.constant dense<0.000000e+00> : vector<128xf32>
    %36 = vector.multi_reduction <add>, %35, %cst_23 [0] : vector<128x128xf32> to vector<128xf32>
    %37 = vector.shape_cast %36 : vector<128xf32> to vector<1x128xf32>
    %c0_24 = arith.constant 0 : index
    %c0_25 = arith.constant 0 : index
    %38 = vector.load %arg10[%c0_24, %c0_25] : memref<1x1xf32, #tpu.memory_space<vmem>>, vector<1x1xf32>
    %39 = vector.broadcast %38 : vector<1x1xf32> to vector<1x128xf32>
    %40 = arith.addf %37, %39 : vector<1x128xf32>
    %41 = arith.negf %40 : vector<1x128xf32>
    %42 = math.exp %41 : vector<1x128xf32>
    %cst_26 = arith.constant 1.000000e+00 : f32
    %43 = vector.broadcast %cst_26 : f32 to vector<1x128xf32>
    %44 = arith.addf %43, %42 : vector<1x128xf32>
    %45 = arith.divf %43, %44 : vector<1x128xf32>
    %c0_27 = arith.constant 0 : index
    %c0_28 = arith.constant 0 : index
    %c0_29 = arith.constant 0 : index
    %46 = vector.load %arg11[%c0_27, %c0_28, %c0_29] : memref<1x1x128xf32, #tpu.memory_space<vmem>>, vector<1x1x128xf32>
    %47 = vector.shape_cast %46 : vector<1x1x128xf32> to vector<1x128xf32>
    %48 = vector.shape_cast %45 : vector<1x128xf32> to vector<1x1x128xf32>
    tpu.vector_store %arg11[%c0_27, %c0_28, %c0_29], %48 {strides = array<i32>} : memref<1x1x128xf32, #tpu.memory_space<vmem>>, vector<1x1x128xf32>,
    return
  }
  func.func @transform_0(%arg0: i32) -> (i32, i32, i32) {
    %c0_i32 = arith.constant 0 : i32
    %c0_i32_0 = arith.constant 0 : i32
    %c0_i32_1 = arith.constant 0 : i32
    return %arg0, %c0_i32, %c0_i32_0 : i32, i32, i32
  }
  func.func @transform_1(%arg0: i32) -> (i32, i32, i32) {
    %c0_i32 = arith.constant 0 : i32
    %c0_i32_0 = arith.constant 0 : i32
    %c0_i32_1 = arith.constant 0 : i32
    return %arg0, %c0_i32, %c0_i32_0 : i32, i32, i32
  }
  func.func @transform_2(%arg0: i32) -> (i32, i32, i32) {
    %c0_i32 = arith.constant 0 : i32
    %c0_i32_0 = arith.constant 0 : i32
    %c0_i32_1 = arith.constant 0 : i32
    return %arg0, %c0_i32, %c0_i32_0 : i32, i32, i32
  }
  func.func @transform_3(%arg0: i32) -> (i32, i32) {
    %c0_i32 = arith.constant 0 : i32
    %c0_i32_0 = arith.constant 0 : i32
    %c0_i32_1 = arith.constant 0 : i32
    return %c0_i32, %c0_i32_0 : i32, i32
  }
  func.func @transform_4(%arg0: i32) -> (i32, i32) {
    %c0_i32 = arith.constant 0 : i32
    %c0_i32_0 = arith.constant 0 : i32
    %c0_i32_1 = arith.constant 0 : i32
    return %c0_i32, %c0_i32_0 : i32, i32
  }
  func.func @transform_5(%arg0: i32) -> (i32, i32) {
    %c0_i32 = arith.constant 0 : i32
    %c0_i32_0 = arith.constant 0 : i32
    %c0_i32_1 = arith.constant 0 : i32
    return %c0_i32, %c0_i32_0 : i32, i32
  }
  func.func @transform_6(%arg0: i32) -> (i32, i32) {
    %c0_i32 = arith.constant 0 : i32
    %c0_i32_0 = arith.constant 0 : i32
    %c0_i32_1 = arith.constant 0 : i32
    return %c0_i32, %c0_i32_0 : i32, i32
  }
  func.func @transform_7(%arg0: i32) -> (i32, i32) {
    %c0_i32 = arith.constant 0 : i32
    %c0_i32_0 = arith.constant 0 : i32
    %c0_i32_1 = arith.constant 0 : i32
    return %c0_i32, %c0_i32_0 : i32, i32
  }
  func.func @transform_8(%arg0: i32) -> (i32, i32) {
    %c0_i32 = arith.constant 0 : i32
    %c0_i32_0 = arith.constant 0 : i32
    %c0_i32_1 = arith.constant 0 : i32
    return %c0_i32, %c0_i32_0 : i32, i32
  }
  func.func @transform_9(%arg0: i32) -> (i32, i32) {
    %c0_i32 = arith.constant 0 : i32
    %c0_i32_0 = arith.constant 0 : i32
    %c0_i32_1 = arith.constant 0 : i32
    return %c0_i32, %c0_i32_0 : i32, i32
  }
  func.func @transform_10(%arg0: i32) -> (i32, i32, i32) {
    %c0_i32 = arith.constant 0 : i32
    %c0_i32_0 = arith.constant 0 : i32
    %c0_i32_1 = arith.constant 0 : i32
    return %arg0, %c0_i32, %c0_i32_0 : i32, i32, i32
  }
}

</mosaic_0001>

<llo_original>
// kernel: tpu_custom_call.1
$region0: #{tpu_custom_call.1}
  #allocation0 [shape = 'u32[]', space=smem, size = 0x4, offset = 0x4, fixed_abs, tag = 'smem constant byte address 0x4 - core index']
  #allocation1 [shape = 'u32[144,128]{1,0:T(1,128)}', space=vmem, size = 0x12000, scoped, tag = 'internal scratch']
  #allocation2 [shape = 'f32[1,1]{1,0:T(1,128)S(1)}', space=vmem, size = 0x200, scoped, tag = 'scoped memory for tpu_custom_call.1']
  %s0 = inlined_call_operand.vmem [shape: s32[1,1,128], index: 0, kind: input, shape index: {}]
  %s1 = inlined_call_operand.hbm [shape: s32[1,1,128], index: 1, kind: input, shape index: {}]
  %s2 = inlined_call_operand.vmem [shape: f32[1,1,128], index: 2, kind: input, shape index: {}]
  %s3 = inlined_call_operand.vmem [shape: f32[128,128], index: 3, kind: input, shape index: {}]
  %s4 = inlined_call_operand.vmem [shape: f32[128,128], index: 4, kind: input, shape index: {}]
  %s5 = inlined_call_operand.vmem [shape: f32[128,128], index: 5, kind: input, shape index: {}]
  %s6 = inlined_call_operand.vmem [shape: f32[128,1], index: 6, kind: input, shape index: {}]
  %s7 = inlined_call_operand.vmem [shape: f32[128,1], index: 7, kind: input, shape index: {}]
  %s8 = inlined_call_operand.vmem [shape: f32[128,1], index: 8, kind: input, shape index: {}]
  %s9 = inlined_call_operand.<no memory space> [shape: f32[1,1], index: 9, kind: input, shape index: {}]
  %s10 = inlined_call_operand.hbm [shape: f32[1,1,128], index: 10, kind: output, shape index: {}]
  %s11 = sld [smem:[#allocation0]]
  $region54: #{tpu_custom_call.1} parent=0
    _
  %s13 = ssub.s32 1, %s11
  %s14 = scalar_select 0, %s13, %s11
  %v15 = vstv %s9
  %16 = vst [vmem:[#allocation2] sm:$0x1] %v15
  $region1: #{tpu_custom_call.1} parent=0
    #allocation3 [shape = 'u8[512]{0}', space=vmem, size = 0x400, scoped, tag = 'input window, operand 1, single buffered']
    #allocation4 [shape = 's32[1]{0}', space=sflag, size = 0x4, scoped, tag = 'scoped memory for tpu_custom_call.1']
    #allocation5 [shape = 's32[1]{0}', space=sflag, size = 0x4, scoped, tag = 'scoped memory for tpu_custom_call.1']
    #allocation6 [shape = 'u8[512]{0}', space=vmem, size = 0x400, scoped, tag = 'output window, operand 0, single buffered']
    %17 = vsyncpa [#allocation4], 0
    %18 = vsyncpa [#allocation5], 0
    // Predicated region
    $region2: #{tpu_custom_call.1} parent=1 // pred_check
      _
    $region3: #{tpu_custom_call.1} parent=1 // pred_check_branch
      %20 = sbr.rel (0) target = $region5
    $region4: #{tpu_custom_call.1} parent=1 // pred_region
      _
    $region5: #{tpu_custom_call.1} parent=1 // pred_fallthru
      _
    // Predicated region
    $region6: #{tpu_custom_call.1} parent=1 // pred_check
      _
    $region7: #{tpu_custom_call.1} parent=1 // pred_check_branch
      %22 = sbr.rel (0) target = $region9
    $region8: #{tpu_custom_call.1} parent=1 // pred_region
      %s24 = ssub.s32 16, 16
      %25 = vsyncadd [#allocation4], %s24
      %s27 = sshll.u32 [#allocation3], 4
      %s28 = int_to_ptr.vmem [resolvable:$true] %s27
      %30 = dma.hbm_to_vmem [thread:$0]  %s1, 16, %s28, [#allocation4]
    $region9: #{tpu_custom_call.1} parent=1 // pred_fallthru
      _
    // Predicated region
    $region10: #{tpu_custom_call.1} parent=1 // pred_check
      _
    $region11: #{tpu_custom_call.1} parent=1 // pred_check_branch
      %32 = sbr.rel (0) target = $region13
    $region12: #{tpu_custom_call.1} parent=1 // pred_region
      _
    $region13: #{tpu_custom_call.1} parent=1 // pred_fallthru
      _
    // Predicated region
    $region14: #{tpu_custom_call.1} parent=1 // pred_check
      _
    $region15: #{tpu_custom_call.1} parent=1 // pred_check_branch
      %34 = sbr.rel (0) target = $region17
    $region16: #{tpu_custom_call.1} parent=1 // pred_region
      _
    $region17: #{tpu_custom_call.1} parent=1 // pred_fallthru
      _
    // Predicated region
    $region18: #{tpu_custom_call.1} parent=1 // pred_check
      _
    $region19: #{tpu_custom_call.1} parent=1 // pred_check_branch
      %36 = sbr.rel (0) target = $region21
    $region20: #{tpu_custom_call.1} parent=1 // pred_region
      _
    $region21: #{tpu_custom_call.1} parent=1 // pred_fallthru
      _
    // Predicated region
    $region22: #{tpu_custom_call.1} parent=1 // pred_check
      _
    $region23: #{tpu_custom_call.1} parent=1 // pred_check_branch
      %38 = sbr.rel (0) target = $region25
    $region24: #{tpu_custom_call.1} parent=1 // pred_region
      _
    $region25: #{tpu_custom_call.1} parent=1 // pred_fallthru
      _
    // Predicated region
    $region26: #{tpu_custom_call.1} parent=1 // pred_check
      _
    $region27: #{tpu_custom_call.1} parent=1 // pred_check_branch
      %40 = sbr.rel (0) target = $region29
    $region28: #{tpu_custom_call.1} parent=1 // pred_region
      _
    $region29: #{tpu_custom_call.1} parent=1 // pred_fallthru
      _
    // Predicated region
    $region30: #{tpu_custom_call.1} parent=1 // pred_check
      _
    $region31: #{tpu_custom_call.1} parent=1 // pred_check_branch
      %42 = sbr.rel (0) target = $region33
    $region32: #{tpu_custom_call.1} parent=1 // pred_region
      _
    $region33: #{tpu_custom_call.1} parent=1 // pred_fallthru
      _
    // Predicated region
    $region34: #{tpu_custom_call.1} parent=1 // pred_check
      _
    $region35: #{tpu_custom_call.1} parent=1 // pred_check_branch
      %44 = sbr.rel (0) target = $region37
    $region36: #{tpu_custom_call.1} parent=1 // pred_region
      _
    $region37: #{tpu_custom_call.1} parent=1 // pred_fallthru
      _
    // Predicated region
    $region38: #{tpu_custom_call.1} parent=1 // pred_check
      _
    $region39: #{tpu_custom_call.1} parent=1 // pred_check_branch
      %46 = sbr.rel (0) target = $region41
    $region40: #{tpu_custom_call.1} parent=1 // pred_region
      _
    $region41: #{tpu_custom_call.1} parent=1 // pred_fallthru
      _
    // Predicated region
    $region42: #{tpu_custom_call.1} parent=1 // pred_check
      _
    $region43: #{tpu_custom_call.1} parent=1 // pred_check_branch
      %48 = sbr.rel (0) target = $region45
    $region44: #{tpu_custom_call.1} parent=1 // pred_region
      %49 = dma.done [#allocation4], 16
    $region45: #{tpu_custom_call.1} parent=1 // pred_fallthru
      _
    %v50 = vld [vmem:[%s0] sm:$0x1]
    %v51 = vld [vmem:[#allocation3] sm:$0x1]
    %v52 = vld [vmem:[%s2] sm:$0x1]
    %v53 = vlaneseq
    %v54 = vshrl.u32 %v53, 7
    %v55 = vadd.s32 %v54, 8
    %v56 = vadd.s32 %v54, 16
    %v57 = vadd.s32 %v54, 24
    %v58 = vadd.s32 %v54, 32
    %v59 = vadd.s32 %v54, 40
    %v60 = vadd.s32 %v54, 48
    %v61 = vadd.s32 %v54, 56
    %v62 = vadd.s32 %v54, 64
    %v63 = vadd.s32 %v54, 72
    %v64 = vadd.s32 %v54, 80
    %v65 = vadd.s32 %v54, 88
    %v66 = vadd.s32 %v54, 96
    %v67 = vadd.s32 %v54, 104
    %v68 = vadd.s32 %v54, 112
    %v69 = vadd.s32 %v54, 120
    %v70 = vlaneseq
    %v71 = vshrl.u32 %v70, 7
    %v72 = vsub.s32 0, %v71
    %v73 = vrot.slane %v50, %v72
    %vm74 = vcmp.eq.s32.totalorder %v54, %v73
    %vm75 = vcmp.eq.s32.totalorder %v55, %v73
    %vm76 = vcmp.eq.s32.totalorder %v56, %v73
    %vm77 = vcmp.eq.s32.totalorder %v57, %v73
    %vm78 = vcmp.eq.s32.totalorder %v58, %v73
    %vm79 = vcmp.eq.s32.totalorder %v59, %v73
    %vm80 = vcmp.eq.s32.totalorder %v60, %v73
    %vm81 = vcmp.eq.s32.totalorder %v61, %v73
    %vm82 = vcmp.eq.s32.totalorder %v62, %v73
    %vm83 = vcmp.eq.s32.totalorder %v63, %v73
    %vm84 = vcmp.eq.s32.totalorder %v64, %v73
    %vm85 = vcmp.eq.s32.totalorder %v65, %v73
    %vm86 = vcmp.eq.s32.totalorder %v66, %v73
    %vm87 = vcmp.eq.s32.totalorder %v67, %v73
    %vm88 = vcmp.eq.s32.totalorder %v68, %v73
    %vm89 = vcmp.eq.s32.totalorder %v69, %v73
    %v90 = vsel %vm74, 1, 0
    %v91 = vsel %vm75, 1, 0
    %v92 = vsel %vm76, 1, 0
    %v93 = vsel %vm77, 1, 0
    %v94 = vsel %vm78, 1, 0
    %v95 = vsel %vm79, 1, 0
    %v96 = vsel %vm80, 1, 0
    %v97 = vsel %vm81, 1, 0
    %v98 = vsel %vm82, 1, 0
    %v99 = vsel %vm83, 1, 0
    %v100 = vsel %vm84, 1, 0
    %v101 = vsel %vm85, 1, 0
    %v102 = vsel %vm86, 1, 0
    %v103 = vsel %vm87, 1, 0
    %v104 = vsel %vm88, 1, 0
    %v105 = vsel %vm89, 1, 0
    %v106 = vcvt.s32.f32 %v90
    %v107 = vcvt.s32.f32 %v91
    %v108 = vcvt.s32.f32 %v92
    %v109 = vcvt.s32.f32 %v93
    %v110 = vcvt.s32.f32 %v94
    %v111 = vcvt.s32.f32 %v95
    %v112 = vcvt.s32.f32 %v96
    %v113 = vcvt.s32.f32 %v97
    %v114 = vcvt.s32.f32 %v98
    %v115 = vcvt.s32.f32 %v99
    %v116 = vcvt.s32.f32 %v100
    %v117 = vcvt.s32.f32 %v101
    %v118 = vcvt.s32.f32 %v102
    %v119 = vcvt.s32.f32 %v103
    %v120 = vcvt.s32.f32 %v104
    %v121 = vcvt.s32.f32 %v105
    %v122 = vlaneseq
    %v123 = vshrl.u32 %v122, 7
    %v124 = vsub.s32 0, %v123
    %v125 = vrot.slane %v51, %v124
    %vm126 = vcmp.eq.s32.totalorder %v54, %v125
    %vm127 = vcmp.eq.s32.totalorder %v55, %v125
    %vm128 = vcmp.eq.s32.totalorder %v56, %v125
    %vm129 = vcmp.eq.s32.totalorder %v57, %v125
    %vm130 = vcmp.eq.s32.totalorder %v58, %v125
    %vm131 = vcmp.eq.s32.totalorder %v59, %v125
    %vm132 = vcmp.eq.s32.totalorder %v60, %v125
    %vm133 = vcmp.eq.s32.totalorder %v61, %v125
    %vm134 = vcmp.eq.s32.totalorder %v62, %v125
    %vm135 = vcmp.eq.s32.totalorder %v63, %v125
    %vm136 = vcmp.eq.s32.totalorder %v64, %v125
    %vm137 = vcmp.eq.s32.totalorder %v65, %v125
    %vm138 = vcmp.eq.s32.totalorder %v66, %v125
    %vm139 = vcmp.eq.s32.totalorder %v67, %v125
    %vm140 = vcmp.eq.s32.totalorder %v68, %v125
    %vm141 = vcmp.eq.s32.totalorder %v69, %v125
    %v142 = vsel %vm126, 1, 0
    %v143 = vsel %vm127, 1, 0
    %v144 = vsel %vm128, 1, 0
    %v145 = vsel %vm129, 1, 0
    %v146 = vsel %vm130, 1, 0
    %v147 = vsel %vm131, 1, 0
    %v148 = vsel %vm132, 1, 0
    %v149 = vsel %vm133, 1, 0
    %v150 = vsel %vm134, 1, 0
    %v151 = vsel %vm135, 1, 0
    %v152 = vsel %vm136, 1, 0
    %v153 = vsel %vm137, 1, 0
    %v154 = vsel %vm138, 1, 0
    %v155 = vsel %vm139, 1, 0
    %v156 = vsel %vm140, 1, 0
    %v157 = vsel %vm141, 1, 0
    %v158 = vcvt.s32.f32 %v142
    %v159 = vcvt.s32.f32 %v143
    %v160 = vcvt.s32.f32 %v144
    %v161 = vcvt.s32.f32 %v145
    %v162 = vcvt.s32.f32 %v146
    %v163 = vcvt.s32.f32 %v147
    %v164 = vcvt.s32.f32 %v148
    %v165 = vcvt.s32.f32 %v149
    %v166 = vcvt.s32.f32 %v150
    %v167 = vcvt.s32.f32 %v151
    %v168 = vcvt.s32.f32 %v152
    %v169 = vcvt.s32.f32 %v153
    %v170 = vcvt.s32.f32 %v154
    %v171 = vcvt.s32.f32 %v155
    %v172 = vcvt.s32.f32 %v156
    %v173 = vcvt.s32.f32 %v157
    %v174 = vld [vmem:[%s3] sm:$0xff]
    %v175 = vld [vmem:[%s3 + $0x8] sm:$0xff]
    %v176 = vld [vmem:[%s3 + $0x10] sm:$0xff]
    %v177 = vld [vmem:[%s3 + $0x18] sm:$0xff]
    %v178 = vld [vmem:[%s3 + $0x20] sm:$0xff]
    %v179 = vld [vmem:[%s3 + $0x28] sm:$0xff]
    %v180 = vld [vmem:[%s3 + $0x30] sm:$0xff]
    %v181 = vld [vmem:[%s3 + $0x38] sm:$0xff]
    %v182 = vld [vmem:[%s3 + $0x40] sm:$0xff]
    %v183 = vld [vmem:[%s3 + $0x48] sm:$0xff]
    %v184 = vld [vmem:[%s3 + $0x50] sm:$0xff]
    %v185 = vld [vmem:[%s3 + $0x58] sm:$0xff]
    %v186 = vld [vmem:[%s3 + $0x60] sm:$0xff]
    %v187 = vld [vmem:[%s3 + $0x68] sm:$0xff]
    %v188 = vld [vmem:[%s3 + $0x70] sm:$0xff]
    %v189 = vld [vmem:[%s3 + $0x78] sm:$0xff]
    %v190 = vld [vmem:[%s4] sm:$0xff]
    %v191 = vld [vmem:[%s4 + $0x8] sm:$0xff]
    %v192 = vld [vmem:[%s4 + $0x10] sm:$0xff]
    %v193 = vld [vmem:[%s4 + $0x18] sm:$0xff]
    %v194 = vld [vmem:[%s4 + $0x20] sm:$0xff]
    %v195 = vld [vmem:[%s4 + $0x28] sm:$0xff]
    %v196 = vld [vmem:[%s4 + $0x30] sm:$0xff]
    %v197 = vld [vmem:[%s4 + $0x38] sm:$0xff]
    %v198 = vld [vmem:[%s4 + $0x40] sm:$0xff]
    %v199 = vld [vmem:[%s4 + $0x48] sm:$0xff]
    %v200 = vld [vmem:[%s4 + $0x50] sm:$0xff]
    %v201 = vld [vmem:[%s4 + $0x58] sm:$0xff]
    %v202 = vld [vmem:[%s4 + $0x60] sm:$0xff]
    %v203 = vld [vmem:[%s4 + $0x68] sm:$0xff]
    %v204 = vld [vmem:[%s4 + $0x70] sm:$0xff]
    %v205 = vld [vmem:[%s4 + $0x78] sm:$0xff]
    %206 = vmatprep.subr.mxu0 0.0
    %207 = vmatpush1.msra.mxu0 %v173
    %208 = vmatprep.subr.mxu0 0.0
    %209 = vmatpush1.msra.mxu0 %v172
    %210 = vmatprep.subr.mxu0 0.0
    %211 = vmatpush1.msra.mxu0 %v171
    %212 = vmatprep.subr.mxu0 0.0
    %213 = vmatpush1.msra.mxu0 %v170
    %214 = vmatprep.subr.mxu0 0.0
    %215 = vmatpush1.msra.mxu0 %v169
    %216 = vmatprep.subr.mxu0 0.0
    %217 = vmatpush1.msra.mxu0 %v168
    %218 = vmatprep.subr.mxu0 0.0
    %219 = vmatpush1.msra.mxu0 %v167
    %220 = vmatprep.subr.mxu0 0.0
    %221 = vmatpush1.msra.mxu0 %v166
    %222 = vmatprep.subr.mxu0 0.0
    %223 = vmatpush1.msra.mxu0 %v165
    %224 = vmatprep.subr.mxu0 0.0
    %225 = vmatpush1.msra.mxu0 %v164
    %226 = vmatprep.subr.mxu0 0.0
    %227 = vmatpush1.msra.mxu0 %v163
    %228 = vmatprep.subr.mxu0 0.0
    %229 = vmatpush1.msra.mxu0 %v162
    %230 = vmatprep.subr.mxu0 0.0
    %231 = vmatpush1.msra.mxu0 %v161
    %232 = vmatprep.subr.mxu0 0.0
    %233 = vmatpush1.msra.mxu0 %v160
    %234 = vmatprep.subr.mxu0 0.0
    %235 = vmatpush1.msra.mxu0 %v159
    %236 = vmatprep.subr.mxu0 0.0
    %237 = vmatpush1.msra.mxu0 %v158
    %238 = vmatprep.subr.mxu0 0.0
    %239 = vmatpush2.msra.mxu0 0.0
    %240 = vmatprep.subr.mxu0 0.0
    %241 = vmatpush2.msra.mxu0 0.0
    %242 = vmatprep.subr.mxu0 0.0
    %243 = vmatpush2.msra.mxu0 0.0
    %244 = vmatprep.subr.mxu0 0.0
    %245 = vmatpush2.msra.mxu0 0.0
    %246 = vmatprep.subr.mxu0 0.0
    %247 = vmatpush2.msra.mxu0 0.0
    %248 = vmatprep.subr.mxu0 0.0
    %249 = vmatpush2.msra.mxu0 0.0
    %250 = vmatprep.subr.mxu0 0.0
    %251 = vmatpush2.msra.mxu0 0.0
    %252 = vmatprep.subr.mxu0 0.0
    %253 = vmatpush2.msra.mxu0 0.0
    %254 = vmatprep.subr.mxu0 0.0
    %255 = vmatpush2.msra.mxu0 0.0
    %256 = vmatprep.subr.mxu0 0.0
    %257 = vmatpush2.msra.mxu0 0.0
    %258 = vmatprep.subr.mxu0 0.0
    %259 = vmatpush2.msra.mxu0 0.0
    %260 = vmatprep.subr.mxu0 0.0
    %261 = vmatpush2.msra.mxu0 0.0
    %262 = vmatprep.subr.mxu0 0.0
    %263 = vmatpush2.msra.mxu0 0.0
    %264 = vmatprep.subr.mxu0 0.0
    %265 = vmatpush2.msra.mxu0 0.0
    %266 = vmatprep.subr.mxu0 0.0
    %267 = vmatpush2.msra.mxu0 0.0
    %268 = vmatprep.subr.mxu0 0.0
    %269 = vmatpush2.msra.mxu0 0.0
    %270 = vmatprep.mubr.f32.mxu0 0.0
    %271 = vmatmul.mubr.f32.gmra.mxu0 %v190
    %v272 = vpop.f32.mrf.mxu0
    %v273 = vadd.f32 0.0, %v272
    %v274 = vpop.f32.mrf.mxu0
    %275 = vmatprep.mubr.f32.mxu0 0.0
    %276 = vmatmul.mubr.f32.gmra.mxu0 %v191
    %v277 = vpop.f32.mrf.mxu0
    %v278 = vadd.f32 0.0, %v277
    %v279 = vpop.f32.mrf.mxu0
    %280 = vmatprep.mubr.f32.mxu0 0.0
    %281 = vmatmul.mubr.f32.gmra.mxu0 %v192
    %v282 = vpop.f32.mrf.mxu0
    %v283 = vadd.f32 0.0, %v282
    %v284 = vpop.f32.mrf.mxu0
    %285 = vmatprep.mubr.f32.mxu0 0.0
    %286 = vmatmul.mubr.f32.gmra.mxu0 %v193
    %v287 = vpop.f32.mrf.mxu0
    %v288 = vadd.f32 0.0, %v287
    %v289 = vpop.f32.mrf.mxu0
    %290 = vmatprep.mubr.f32.mxu0 0.0
    %291 = vmatmul.mubr.f32.gmra.mxu0 %v194
    %v292 = vpop.f32.mrf.mxu0
    %v293 = vadd.f32 0.0, %v292
    %v294 = vpop.f32.mrf.mxu0
    %295 = vmatprep.mubr.f32.mxu0 0.0
    %296 = vmatmul.mubr.f32.gmra.mxu0 %v195
    %v297 = vpop.f32.mrf.mxu0
    %v298 = vadd.f32 0.0, %v297
    %v299 = vpop.f32.mrf.mxu0
    %300 = vmatprep.mubr.f32.mxu0 0.0
    %301 = vmatmul.mubr.f32.gmra.mxu0 %v196
    %v302 = vpop.f32.mrf.mxu0
    %v303 = vadd.f32 0.0, %v302
    %v304 = vpop.f32.mrf.mxu0
    %305 = vmatprep.mubr.f32.mxu0 0.0
    %306 = vmatmul.mubr.f32.gmra.mxu0 %v197
    %v307 = vpop.f32.mrf.mxu0
    %v308 = vadd.f32 0.0, %v307
    %v309 = vpop.f32.mrf.mxu0
    %310 = vmatprep.mubr.f32.mxu0 0.0
    %311 = vmatmul.mubr.f32.gmra.mxu0 %v198
    %v312 = vpop.f32.mrf.mxu0
    %v313 = vadd.f32 0.0, %v312
    %v314 = vpop.f32.mrf.mxu0
    %315 = vmatprep.mubr.f32.mxu0 0.0
    %316 = vmatmul.mubr.f32.gmra.mxu0 %v199
    %v317 = vpop.f32.mrf.mxu0
    %v318 = vadd.f32 0.0, %v317
    %v319 = vpop.f32.mrf.mxu0
    %320 = vmatprep.mubr.f32.mxu0 0.0
    %321 = vmatmul.mubr.f32.gmra.mxu0 %v200
    %v322 = vpop.f32.mrf.mxu0
    %v323 = vadd.f32 0.0, %v322
    %v324 = vpop.f32.mrf.mxu0
    %325 = vmatprep.mubr.f32.mxu0 0.0
    %326 = vmatmul.mubr.f32.gmra.mxu0 %v201
    %v327 = vpop.f32.mrf.mxu0
    %v328 = vadd.f32 0.0, %v327
    %v329 = vpop.f32.mrf.mxu0
    %330 = vmatprep.mubr.f32.mxu0 0.0
    %331 = vmatmul.mubr.f32.gmra.mxu0 %v202
    %v332 = vpop.f32.mrf.mxu0
    %v333 = vadd.f32 0.0, %v332
    %v334 = vpop.f32.mrf.mxu0
    %335 = vmatprep.mubr.f32.mxu0 0.0
    %336 = vmatmul.mubr.f32.gmra.mxu0 %v203
    %v337 = vpop.f32.mrf.mxu0
    %v338 = vadd.f32 0.0, %v337
    %v339 = vpop.f32.mrf.mxu0
    %340 = vmatprep.mubr.f32.mxu0 0.0
    %341 = vmatmul.mubr.f32.gmra.mxu0 %v204
    %v342 = vpop.f32.mrf.mxu0
    %v343 = vadd.f32 0.0, %v342
    %v344 = vpop.f32.mrf.mxu0
    %345 = vmatprep.mubr.f32.mxu0 0.0
    %346 = vmatmul.mubr.f32.gmra.mxu0 %v205
    %v347 = vpop.f32.mrf.mxu0
    %v348 = vadd.f32 0.0, %v347
    %v349 = vpop.f32.mrf.mxu0
    %350 = vdwg.mxu0
    %351 = vmatprep.subr.mxu0 0.0
    %352 = vmatpush1.msra.mxu0 %v121
    %353 = vmatprep.subr.mxu0 0.0
    %354 = vmatpush1.msra.mxu0 %v120
    %355 = vmatprep.subr.mxu0 0.0
    %356 = vmatpush1.msra.mxu0 %v119
    %357 = vmatprep.subr.mxu0 0.0
    %358 = vmatpush1.msra.mxu0 %v118
    %359 = vmatprep.subr.mxu0 0.0
    %360 = vmatpush1.msra.mxu0 %v117
    %361 = vmatprep.subr.mxu0 0.0
    %362 = vmatpush1.msra.mxu0 %v116
    %363 = vmatprep.subr.mxu0 0.0
    %364 = vmatpush1.msra.mxu0 %v115
    %365 = vmatprep.subr.mxu0 0.0
    %366 = vmatpush1.msra.mxu0 %v114
    %367 = vmatprep.subr.mxu0 0.0
    %368 = vmatpush1.msra.mxu0 %v113
    %369 = vmatprep.subr.mxu0 0.0
    %370 = vmatpush1.msra.mxu0 %v112
    %371 = vmatprep.subr.mxu0 0.0
    %372 = vmatpush1.msra.mxu0 %v111
    %373 = vmatprep.subr.mxu0 0.0
    %374 = vmatpush1.msra.mxu0 %v110
    %375 = vmatprep.subr.mxu0 0.0
    %376 = vmatpush1.msra.mxu0 %v109
    %377 = vmatprep.subr.mxu0 0.0
    %378 = vmatpush1.msra.mxu0 %v108
    %379 = vmatprep.subr.mxu0 0.0
    %380 = vmatpush1.msra.mxu0 %v107
    %381 = vmatprep.subr.mxu0 0.0
    %382 = vmatpush1.msra.mxu0 %v106
    %383 = vmatprep.subr.mxu0 0.0
    %384 = vmatpush2.msra.mxu0 0.0
    %385 = vmatprep.subr.mxu0 0.0
    %386 = vmatpush2.msra.mxu0 0.0
    %387 = vmatprep.subr.mxu0 0.0
    %388 = vmatpush2.msra.mxu0 0.0
    %389 = vmatprep.subr.mxu0 0.0
    %390 = vmatpush2.msra.mxu0 0.0
    %391 = vmatprep.subr.mxu0 0.0
    %392 = vmatpush2.msra.mxu0 0.0
    %393 = vmatprep.subr.mxu0 0.0
    %394 = vmatpush2.msra.mxu0 0.0
    %395 = vmatprep.subr.mxu0 0.0
    %396 = vmatpush2.msra.mxu0 0.0
    %397 = vmatprep.subr.mxu0 0.0
    %398 = vmatpush2.msra.mxu0 0.0
    %399 = vmatprep.subr.mxu0 0.0
    %400 = vmatpush2.msra.mxu0 0.0
    %401 = vmatprep.subr.mxu0 0.0
    %402 = vmatpush2.msra.mxu0 0.0
    %403 = vmatprep.subr.mxu0 0.0
    %404 = vmatpush2.msra.mxu0 0.0
    %405 = vmatprep.subr.mxu0 0.0
    %406 = vmatpush2.msra.mxu0 0.0
    %407 = vmatprep.subr.mxu0 0.0
    %408 = vmatpush2.msra.mxu0 0.0
    %409 = vmatprep.subr.mxu0 0.0
    %410 = vmatpush2.msra.mxu0 0.0
    %411 = vmatprep.subr.mxu0 0.0
    %412 = vmatpush2.msra.mxu0 0.0
    %413 = vmatprep.subr.mxu0 0.0
    %414 = vmatpush2.msra.mxu0 0.0
    %415 = vmatprep.mubr.f32.mxu0 0.0
    %416 = vmatmul.mubr.f32.gmra.mxu0 %v174
    %v417 = vpop.f32.mrf.mxu0
    %v418 = vadd.f32 %v273, %v417
    %v419 = vpop.f32.mrf.mxu0
    %420 = vmatprep.mubr.f32.mxu0 0.0
    %421 = vmatmul.mubr.f32.gmra.mxu0 %v175
    %v422 = vpop.f32.mrf.mxu0
    %v423 = vadd.f32 %v278, %v422
    %v424 = vpop.f32.mrf.mxu0
    %425 = vmatprep.mubr.f32.mxu0 0.0
    %426 = vmatmul.mubr.f32.gmra.mxu0 %v176
    %v427 = vpop.f32.mrf.mxu0
    %v428 = vadd.f32 %v283, %v427
    %v429 = vpop.f32.mrf.mxu0
    %430 = vmatprep.mubr.f32.mxu0 0.0
    %431 = vmatmul.mubr.f32.gmra.mxu0 %v177
    %v432 = vpop.f32.mrf.mxu0
    %v433 = vadd.f32 %v288, %v432
    %v434 = vpop.f32.mrf.mxu0
    %435 = vmatprep.mubr.f32.mxu0 0.0
    %436 = vmatmul.mubr.f32.gmra.mxu0 %v178
    %v437 = vpop.f32.mrf.mxu0
    %v438 = vadd.f32 %v293, %v437
    %v439 = vpop.f32.mrf.mxu0
    %440 = vmatprep.mubr.f32.mxu0 0.0
    %441 = vmatmul.mubr.f32.gmra.mxu0 %v179
    %v442 = vpop.f32.mrf.mxu0
    %v443 = vadd.f32 %v298, %v442
    %v444 = vpop.f32.mrf.mxu0
    %445 = vmatprep.mubr.f32.mxu0 0.0
    %446 = vmatmul.mubr.f32.gmra.mxu0 %v180
    %v447 = vpop.f32.mrf.mxu0
    %v448 = vadd.f32 %v303, %v447
    %v449 = vpop.f32.mrf.mxu0
    %450 = vmatprep.mubr.f32.mxu0 0.0
    %451 = vmatmul.mubr.f32.gmra.mxu0 %v181
    %v452 = vpop.f32.mrf.mxu0
    %v453 = vadd.f32 %v308, %v452
    %v454 = vpop.f32.mrf.mxu0
    %455 = vmatprep.mubr.f32.mxu0 0.0
    %456 = vmatmul.mubr.f32.gmra.mxu0 %v182
    %v457 = vpop.f32.mrf.mxu0
    %v458 = vadd.f32 %v313, %v457
    %v459 = vpop.f32.mrf.mxu0
    %460 = vmatprep.mubr.f32.mxu0 0.0
    %461 = vmatmul.mubr.f32.gmra.mxu0 %v183
    %v462 = vpop.f32.mrf.mxu0
    %v463 = vadd.f32 %v318, %v462
    %v464 = vpop.f32.mrf.mxu0
    %465 = vmatprep.mubr.f32.mxu0 0.0
    %466 = vmatmul.mubr.f32.gmra.mxu0 %v184
    %v467 = vpop.f32.mrf.mxu0
    %v468 = vadd.f32 %v323, %v467
    %v469 = vpop.f32.mrf.mxu0
    %470 = vmatprep.mubr.f32.mxu0 0.0
    %471 = vmatmul.mubr.f32.gmra.mxu0 %v185
    %v472 = vpop.f32.mrf.mxu0
    %v473 = vadd.f32 %v328, %v472
    %v474 = vpop.f32.mrf.mxu0
    %475 = vmatprep.mubr.f32.mxu0 0.0
    %476 = vmatmul.mubr.f32.gmra.mxu0 %v186
    %v477 = vpop.f32.mrf.mxu0
    %v478 = vadd.f32 %v333, %v477
    %v479 = vpop.f32.mrf.mxu0
    %480 = vmatprep.mubr.f32.mxu0 0.0
    %481 = vmatmul.mubr.f32.gmra.mxu0 %v187
    %v482 = vpop.f32.mrf.mxu0
    %v483 = vadd.f32 %v338, %v482
    %v484 = vpop.f32.mrf.mxu0
    %485 = vmatprep.mubr.f32.mxu0 0.0
    %486 = vmatmul.mubr.f32.gmra.mxu0 %v188
    %v487 = vpop.f32.mrf.mxu0
    %v488 = vadd.f32 %v343, %v487
    %v489 = vpop.f32.mrf.mxu0
    %490 = vmatprep.mubr.f32.mxu0 0.0
    %491 = vmatmul.mubr.f32.gmra.mxu0 %v189
    %v492 = vpop.f32.mrf.mxu0
    %v493 = vadd.f32 %v348, %v492
    %v494 = vpop.f32.mrf.mxu0
    %495 = vdwg.mxu0
    %v496 = vld [vmem:[%s5] sm:$0xff]
    %v497 = vld [vmem:[%s5 + $0x8] sm:$0xff]
    %v498 = vld [vmem:[%s5 + $0x10] sm:$0xff]
    %v499 = vld [vmem:[%s5 + $0x18] sm:$0xff]
    %v500 = vld [vmem:[%s5 + $0x20] sm:$0xff]
    %v501 = vld [vmem:[%s5 + $0x28] sm:$0xff]
    %v502 = vld [vmem:[%s5 + $0x30] sm:$0xff]
    %v503 = vld [vmem:[%s5 + $0x38] sm:$0xff]
    %v504 = vld [vmem:[%s5 + $0x40] sm:$0xff]
    %v505 = vld [vmem:[%s5 + $0x48] sm:$0xff]
    %v506 = vld [vmem:[%s5 + $0x50] sm:$0xff]
    %v507 = vld [vmem:[%s5 + $0x58] sm:$0xff]
    %v508 = vld [vmem:[%s5 + $0x60] sm:$0xff]
    %v509 = vld [vmem:[%s5 + $0x68] sm:$0xff]
    %v510 = vld [vmem:[%s5 + $0x70] sm:$0xff]
    %v511 = vld [vmem:[%s5 + $0x78] sm:$0xff]
    %v512 = vld [vmem:[%s6] sm:$0xff]
    %v513 = vld [vmem:[%s6 + $0x8] sm:$0xff]
    %v514 = vld [vmem:[%s6 + $0x10] sm:$0xff]
    %v515 = vld [vmem:[%s6 + $0x18] sm:$0xff]
    %v516 = vld [vmem:[%s6 + $0x20] sm:$0xff]
    %v517 = vld [vmem:[%s6 + $0x28] sm:$0xff]
    %v518 = vld [vmem:[%s6 + $0x30] sm:$0xff]
    %v519 = vld [vmem:[%s6 + $0x38] sm:$0xff]
    %v520 = vld [vmem:[%s6 + $0x40] sm:$0xff]
    %v521 = vld [vmem:[%s6 + $0x48] sm:$0xff]
    %v522 = vld [vmem:[%s6 + $0x50] sm:$0xff]
    %v523 = vld [vmem:[%s6 + $0x58] sm:$0xff]
    %v524 = vld [vmem:[%s6 + $0x60] sm:$0xff]
    %v525 = vld [vmem:[%s6 + $0x68] sm:$0xff]
    %v526 = vld [vmem:[%s6 + $0x70] sm:$0xff]
    %v527 = vld [vmem:[%s6 + $0x78] sm:$0xff]
    %529 = vset.pattern.permute.xlu0 0
    %530 = vperm.xlu0 %529, %v512
    %v531 = vpop.permute.xlu0 %530
    %534 = vset.pattern.permute.xlu0 0
    %535 = vperm.xlu0 %534, %v513
    %v536 = vpop.permute.xlu0 %535
    %539 = vset.pattern.permute.xlu0 0
    %540 = vperm.xlu0 %539, %v514
    %v541 = vpop.permute.xlu0 %540
    %544 = vset.pattern.permute.xlu0 0
    %545 = vperm.xlu0 %544, %v515
    %v546 = vpop.permute.xlu0 %545
    %549 = vset.pattern.permute.xlu0 0
    %550 = vperm.xlu0 %549, %v516
    %v551 = vpop.permute.xlu0 %550
    %554 = vset.pattern.permute.xlu0 0
    %555 = vperm.xlu0 %554, %v517
    %v556 = vpop.permute.xlu0 %555
    %559 = vset.pattern.permute.xlu0 0
    %560 = vperm.xlu0 %559, %v518
    %v561 = vpop.permute.xlu0 %560
    %564 = vset.pattern.permute.xlu0 0
    %565 = vperm.xlu0 %564, %v519
    %v566 = vpop.permute.xlu0 %565
    %569 = vset.pattern.permute.xlu0 0
    %570 = vperm.xlu0 %569, %v520
    %v571 = vpop.permute.xlu0 %570
    %574 = vset.pattern.permute.xlu0 0
    %575 = vperm.xlu0 %574, %v521
    %v576 = vpop.permute.xlu0 %575
    %579 = vset.pattern.permute.xlu0 0
    %580 = vperm.xlu0 %579, %v522
    %v581 = vpop.permute.xlu0 %580
    %584 = vset.pattern.permute.xlu0 0
    %585 = vperm.xlu0 %584, %v523
    %v586 = vpop.permute.xlu0 %585
    %589 = vset.pattern.permute.xlu0 0
    %590 = vperm.xlu0 %589, %v524
    %v591 = vpop.permute.xlu0 %590
    %594 = vset.pattern.permute.xlu0 0
    %595 = vperm.xlu0 %594, %v525
    %v596 = vpop.permute.xlu0 %595
    %599 = vset.pattern.permute.xlu0 0
    %600 = vperm.xlu0 %599, %v526
    %v601 = vpop.permute.xlu0 %600
    %604 = vset.pattern.permute.xlu0 0
    %605 = vperm.xlu0 %604, %v527
    %v606 = vpop.permute.xlu0 %605
    %v609 = vlaneseq
    %v610 = vshrl.u32 %v609, 7
    %v611 = vsub.s32 0, %v610
    %v612 = vrot.slane %v52, %v611
    %v614 = vmul.f32 %v531, %v612
    %v615 = vmul.f32 %v536, %v612
    %v616 = vmul.f32 %v541, %v612
    %v617 = vmul.f32 %v546, %v612
    %v618 = vmul.f32 %v551, %v612
    %v619 = vmul.f32 %v556, %v612
    %v620 = vmul.f32 %v561, %v612
    %v621 = vmul.f32 %v566, %v612
    %v622 = vmul.f32 %v571, %v612
    %v623 = vmul.f32 %v576, %v612
    %v624 = vmul.f32 %v581, %v612
    %v625 = vmul.f32 %v586, %v612
    %v626 = vmul.f32 %v591, %v612
    %v627 = vmul.f32 %v596, %v612
    %v628 = vmul.f32 %v601, %v612
    %v629 = vmul.f32 %v606, %v612
    %630 = vmatprep.subr.mxu0 0.0
    %631 = vmatpush1.msra.mxu0 %v493
    %632 = vmatprep.subr.mxu0 0.0
    %633 = vmatpush1.msra.mxu0 %v488
    %634 = vmatprep.subr.mxu0 0.0
    %635 = vmatpush1.msra.mxu0 %v483
    %636 = vmatprep.subr.mxu0 0.0
    %637 = vmatpush1.msra.mxu0 %v478
    %638 = vmatprep.subr.mxu0 0.0
    %639 = vmatpush1.msra.mxu0 %v473
    %640 = vmatprep.subr.mxu0 0.0
    %641 = vmatpush1.msra.mxu0 %v468
    %642 = vmatprep.subr.mxu0 0.0
    %643 = vmatpush1.msra.mxu0 %v463
    %644 = vmatprep.subr.mxu0 0.0
    %645 = vmatpush1.msra.mxu0 %v458
    %646 = vmatprep.subr.mxu0 0.0
    %647 = vmatpush1.msra.mxu0 %v453
    %648 = vmatprep.subr.mxu0 0.0
    %649 = vmatpush1.msra.mxu0 %v448
    %650 = vmatprep.subr.mxu0 0.0
    %651 = vmatpush1.msra.mxu0 %v443
    %652 = vmatprep.subr.mxu0 0.0
    %653 = vmatpush1.msra.mxu0 %v438
    %654 = vmatprep.subr.mxu0 0.0
    %655 = vmatpush1.msra.mxu0 %v433
    %656 = vmatprep.subr.mxu0 0.0
    %657 = vmatpush1.msra.mxu0 %v428
    %658 = vmatprep.subr.mxu0 0.0
    %659 = vmatpush1.msra.mxu0 %v423
    %660 = vmatprep.subr.mxu0 0.0
    %661 = vmatpush1.msra.mxu0 %v418
    %662 = vmatprep.subr.mxu0 0.0
    %663 = vmatpush2.msra.mxu0 0.0
    %664 = vmatprep.subr.mxu0 0.0
    %665 = vmatpush2.msra.mxu0 0.0
    %666 = vmatprep.subr.mxu0 0.0
    %667 = vmatpush2.msra.mxu0 0.0
    %668 = vmatprep.subr.mxu0 0.0
    %669 = vmatpush2.msra.mxu0 0.0
    %670 = vmatprep.subr.mxu0 0.0
    %671 = vmatpush2.msra.mxu0 0.0
    %672 = vmatprep.subr.mxu0 0.0
    %673 = vmatpush2.msra.mxu0 0.0
    %674 = vmatprep.subr.mxu0 0.0
    %675 = vmatpush2.msra.mxu0 0.0
    %676 = vmatprep.subr.mxu0 0.0
    %677 = vmatpush2.msra.mxu0 0.0
    %678 = vmatprep.subr.mxu0 0.0
    %679 = vmatpush2.msra.mxu0 0.0
    %680 = vmatprep.subr.mxu0 0.0
    %681 = vmatpush2.msra.mxu0 0.0
    %682 = vmatprep.subr.mxu0 0.0
    %683 = vmatpush2.msra.mxu0 0.0
    %684 = vmatprep.subr.mxu0 0.0
    %685 = vmatpush2.msra.mxu0 0.0
    %686 = vmatprep.subr.mxu0 0.0
    %687 = vmatpush2.msra.mxu0 0.0
    %688 = vmatprep.subr.mxu0 0.0
    %689 = vmatpush2.msra.mxu0 0.0
    %690 = vmatprep.subr.mxu0 0.0
    %691 = vmatpush2.msra.mxu0 0.0
    %692 = vmatprep.subr.mxu0 0.0
    %693 = vmatpush2.msra.mxu0 0.0
    %694 = vmatprep.mubr.f32.mxu0 0.0
    %695 = vmatmul.mubr.f32.gmra.mxu0 %v496
    %v696 = vpop.f32.mrf.mxu0
    %v697 = vadd.f32 %v614, %v696
    %v698 = vpop.f32.mrf.mxu0
    %699 = vmatprep.mubr.f32.mxu0 0.0
    %700 = vmatmul.mubr.f32.gmra.mxu0 %v497
    %v701 = vpop.f32.mrf.mxu0
    %v702 = vadd.f32 %v615, %v701
    %v703 = vpop.f32.mrf.mxu0
    %704 = vmatprep.mubr.f32.mxu0 0.0
    %705 = vmatmul.mubr.f32.gmra.mxu0 %v498
    %v706 = vpop.f32.mrf.mxu0
    %v707 = vadd.f32 %v616, %v706
    %v708 = vpop.f32.mrf.mxu0
    %709 = vmatprep.mubr.f32.mxu0 0.0
    %710 = vmatmul.mubr.f32.gmra.mxu0 %v499
    %v711 = vpop.f32.mrf.mxu0
    %v712 = vadd.f32 %v617, %v711
    %v713 = vpop.f32.mrf.mxu0
    %714 = vmatprep.mubr.f32.mxu0 0.0
    %715 = vmatmul.mubr.f32.gmra.mxu0 %v500
    %v716 = vpop.f32.mrf.mxu0
    %v717 = vadd.f32 %v618, %v716
    %v718 = vpop.f32.mrf.mxu0
    %719 = vmatprep.mubr.f32.mxu0 0.0
    %720 = vmatmul.mubr.f32.gmra.mxu0 %v501
    %v721 = vpop.f32.mrf.mxu0
    %v722 = vadd.f32 %v619, %v721
    %v723 = vpop.f32.mrf.mxu0
    %724 = vmatprep.mubr.f32.mxu0 0.0
    %725 = vmatmul.mubr.f32.gmra.mxu0 %v502
    %v726 = vpop.f32.mrf.mxu0
    %v727 = vadd.f32 %v620, %v726
    %v728 = vpop.f32.mrf.mxu0
    %729 = vmatprep.mubr.f32.mxu0 0.0
    %730 = vmatmul.mubr.f32.gmra.mxu0 %v503
    %v731 = vpop.f32.mrf.mxu0
    %v732 = vadd.f32 %v621, %v731
    %v733 = vpop.f32.mrf.mxu0
    %734 = vmatprep.mubr.f32.mxu0 0.0
    %735 = vmatmul.mubr.f32.gmra.mxu0 %v504
    %v736 = vpop.f32.mrf.mxu0
    %v737 = vadd.f32 %v622, %v736
    %v738 = vpop.f32.mrf.mxu0
    %739 = vmatprep.mubr.f32.mxu0 0.0
    %740 = vmatmul.mubr.f32.gmra.mxu0 %v505
    %v741 = vpop.f32.mrf.mxu0
    %v742 = vadd.f32 %v623, %v741
    %v743 = vpop.f32.mrf.mxu0
    %744 = vmatprep.mubr.f32.mxu0 0.0
    %745 = vmatmul.mubr.f32.gmra.mxu0 %v506
    %v746 = vpop.f32.mrf.mxu0
    %v747 = vadd.f32 %v624, %v746
    %v748 = vpop.f32.mrf.mxu0
    %749 = vmatprep.mubr.f32.mxu0 0.0
    %750 = vmatmul.mubr.f32.gmra.mxu0 %v507
    %v751 = vpop.f32.mrf.mxu0
    %v752 = vadd.f32 %v625, %v751
    %v753 = vpop.f32.mrf.mxu0
    %754 = vmatprep.mubr.f32.mxu0 0.0
    %755 = vmatmul.mubr.f32.gmra.mxu0 %v508
    %v756 = vpop.f32.mrf.mxu0
    %v757 = vadd.f32 %v626, %v756
    %v758 = vpop.f32.mrf.mxu0
    %759 = vmatprep.mubr.f32.mxu0 0.0
    %760 = vmatmul.mubr.f32.gmra.mxu0 %v509
    %v761 = vpop.f32.mrf.mxu0
    %v762 = vadd.f32 %v627, %v761
    %v763 = vpop.f32.mrf.mxu0
    %764 = vmatprep.mubr.f32.mxu0 0.0
    %765 = vmatmul.mubr.f32.gmra.mxu0 %v510
    %v766 = vpop.f32.mrf.mxu0
    %v767 = vadd.f32 %v628, %v766
    %v768 = vpop.f32.mrf.mxu0
    %769 = vmatprep.mubr.f32.mxu0 0.0
    %770 = vmatmul.mubr.f32.gmra.mxu0 %v511
    %v771 = vpop.f32.mrf.mxu0
    %v772 = vadd.f32 %v629, %v771
    %v773 = vpop.f32.mrf.mxu0
    %774 = vdwg.mxu0
    %v775 = vld [vmem:[%s7] sm:$0xff]
    %v776 = vld [vmem:[%s7 + $0x8] sm:$0xff]
    %v777 = vld [vmem:[%s7 + $0x10] sm:$0xff]
    %v778 = vld [vmem:[%s7 + $0x18] sm:$0xff]
    %v779 = vld [vmem:[%s7 + $0x20] sm:$0xff]
    %v780 = vld [vmem:[%s7 + $0x28] sm:$0xff]
    %v781 = vld [vmem:[%s7 + $0x30] sm:$0xff]
    %v782 = vld [vmem:[%s7 + $0x38] sm:$0xff]
    %v783 = vld [vmem:[%s7 + $0x40] sm:$0xff]
    %v784 = vld [vmem:[%s7 + $0x48] sm:$0xff]
    %v785 = vld [vmem:[%s7 + $0x50] sm:$0xff]
    %v786 = vld [vmem:[%s7 + $0x58] sm:$0xff]
    %v787 = vld [vmem:[%s7 + $0x60] sm:$0xff]
    %v788 = vld [vmem:[%s7 + $0x68] sm:$0xff]
    %v789 = vld [vmem:[%s7 + $0x70] sm:$0xff]
    %v790 = vld [vmem:[%s7 + $0x78] sm:$0xff]
    %792 = vset.pattern.permute.xlu0 0
    %793 = vperm.xlu0 %792, %v775
    %v794 = vpop.permute.xlu0 %793
    %797 = vset.pattern.permute.xlu0 0
    %798 = vperm.xlu0 %797, %v776
    %v799 = vpop.permute.xlu0 %798
    %802 = vset.pattern.permute.xlu0 0
    %803 = vperm.xlu0 %802, %v777
    %v804 = vpop.permute.xlu0 %803
    %807 = vset.pattern.permute.xlu0 0
    %808 = vperm.xlu0 %807, %v778
    %v809 = vpop.permute.xlu0 %808
    %812 = vset.pattern.permute.xlu0 0
    %813 = vperm.xlu0 %812, %v779
    %v814 = vpop.permute.xlu0 %813
    %817 = vset.pattern.permute.xlu0 0
    %818 = vperm.xlu0 %817, %v780
    %v819 = vpop.permute.xlu0 %818
    %822 = vset.pattern.permute.xlu0 0
    %823 = vperm.xlu0 %822, %v781
    %v824 = vpop.permute.xlu0 %823
    %827 = vset.pattern.permute.xlu0 0
    %828 = vperm.xlu0 %827, %v782
    %v829 = vpop.permute.xlu0 %828
    %832 = vset.pattern.permute.xlu0 0
    %833 = vperm.xlu0 %832, %v783
    %v834 = vpop.permute.xlu0 %833
    %837 = vset.pattern.permute.xlu0 0
    %838 = vperm.xlu0 %837, %v784
    %v839 = vpop.permute.xlu0 %838
    %842 = vset.pattern.permute.xlu0 0
    %843 = vperm.xlu0 %842, %v785
    %v844 = vpop.permute.xlu0 %843
    %847 = vset.pattern.permute.xlu0 0
    %848 = vperm.xlu0 %847, %v786
    %v849 = vpop.permute.xlu0 %848
    %852 = vset.pattern.permute.xlu0 0
    %853 = vperm.xlu0 %852, %v787
    %v854 = vpop.permute.xlu0 %853
    %857 = vset.pattern.permute.xlu0 0
    %858 = vperm.xlu0 %857, %v788
    %v859 = vpop.permute.xlu0 %858
    %862 = vset.pattern.permute.xlu0 0
    %863 = vperm.xlu0 %862, %v789
    %v864 = vpop.permute.xlu0 %863
    %867 = vset.pattern.permute.xlu0 0
    %868 = vperm.xlu0 %867, %v790
    %v869 = vpop.permute.xlu0 %868
    %v871 = vadd.f32 %v697, %v794
    %v872 = vadd.f32 %v702, %v799
    %v873 = vadd.f32 %v707, %v804
    %v874 = vadd.f32 %v712, %v809
    %v875 = vadd.f32 %v717, %v814
    %v876 = vadd.f32 %v722, %v819
    %v877 = vadd.f32 %v727, %v824
    %v878 = vadd.f32 %v732, %v829
    %v879 = vadd.f32 %v737, %v834
    %v880 = vadd.f32 %v742, %v839
    %v881 = vadd.f32 %v747, %v844
    %v882 = vadd.f32 %v752, %v849
    %v883 = vadd.f32 %v757, %v854
    %v884 = vadd.f32 %v762, %v859
    %v885 = vadd.f32 %v767, %v864
    %v886 = vadd.f32 %v772, %v869
    %v887 = vmax.f32 %v871, 0.0
    %v888 = vmax.f32 %v872, 0.0
    %v889 = vmax.f32 %v873, 0.0
    %v890 = vmax.f32 %v874, 0.0
    %v891 = vmax.f32 %v875, 0.0
    %v892 = vmax.f32 %v876, 0.0
    %v893 = vmax.f32 %v877, 0.0
    %v894 = vmax.f32 %v878, 0.0
    %v895 = vmax.f32 %v879, 0.0
    %v896 = vmax.f32 %v880, 0.0
    %v897 = vmax.f32 %v881, 0.0
    %v898 = vmax.f32 %v882, 0.0
    %v899 = vmax.f32 %v883, 0.0
    %v900 = vmax.f32 %v884, 0.0
    %v901 = vmax.f32 %v885, 0.0
    %v902 = vmax.f32 %v886, 0.0
    %v903 = vld [vmem:[%s8] sm:$0xff]
    %v904 = vld [vmem:[%s8 + $0x8] sm:$0xff]
    %v905 = vld [vmem:[%s8 + $0x10] sm:$0xff]
    %v906 = vld [vmem:[%s8 + $0x18] sm:$0xff]
    %v907 = vld [vmem:[%s8 + $0x20] sm:$0xff]
    %v908 = vld [vmem:[%s8 + $0x28] sm:$0xff]
    %v909 = vld [vmem:[%s8 + $0x30] sm:$0xff]
    %v910 = vld [vmem:[%s8 + $0x38] sm:$0xff]
    %v911 = vld [vmem:[%s8 + $0x40] sm:$0xff]
    %v912 = vld [vmem:[%s8 + $0x48] sm:$0xff]
    %v913 = vld [vmem:[%s8 + $0x50] sm:$0xff]
    %v914 = vld [vmem:[%s8 + $0x58] sm:$0xff]
    %v915 = vld [vmem:[%s8 + $0x60] sm:$0xff]
    %v916 = vld [vmem:[%s8 + $0x68] sm:$0xff]
    %v917 = vld [vmem:[%s8 + $0x70] sm:$0xff]
    %v918 = vld [vmem:[%s8 + $0x78] sm:$0xff]
    %920 = vset.pattern.permute.xlu0 0
    %921 = vperm.xlu0 %920, %v903
    %v922 = vpop.permute.xlu0 %921
    %925 = vset.pattern.permute.xlu0 0
    %926 = vperm.xlu0 %925, %v904
    %v927 = vpop.permute.xlu0 %926
    %930 = vset.pattern.permute.xlu0 0
    %931 = vperm.xlu0 %930, %v905
    %v932 = vpop.permute.xlu0 %931
    %935 = vset.pattern.permute.xlu0 0
    %936 = vperm.xlu0 %935, %v906
    %v937 = vpop.permute.xlu0 %936
    %940 = vset.pattern.permute.xlu0 0
    %941 = vperm.xlu0 %940, %v907
    %v942 = vpop.permute.xlu0 %941
    %945 = vset.pattern.permute.xlu0 0
    %946 = vperm.xlu0 %945, %v908
    %v947 = vpop.permute.xlu0 %946
    %950 = vset.pattern.permute.xlu0 0
    %951 = vperm.xlu0 %950, %v909
    %v952 = vpop.permute.xlu0 %951
    %955 = vset.pattern.permute.xlu0 0
    %956 = vperm.xlu0 %955, %v910
    %v957 = vpop.permute.xlu0 %956
    %960 = vset.pattern.permute.xlu0 0
    %961 = vperm.xlu0 %960, %v911
    %v962 = vpop.permute.xlu0 %961
    %965 = vset.pattern.permute.xlu0 0
    %966 = vperm.xlu0 %965, %v912
    %v967 = vpop.permute.xlu0 %966
    %970 = vset.pattern.permute.xlu0 0
    %971 = vperm.xlu0 %970, %v913
    %v972 = vpop.permute.xlu0 %971
    %975 = vset.pattern.permute.xlu0 0
    %976 = vperm.xlu0 %975, %v914
    %v977 = vpop.permute.xlu0 %976
    %980 = vset.pattern.permute.xlu0 0
    %981 = vperm.xlu0 %980, %v915
    %v982 = vpop.permute.xlu0 %981
    %985 = vset.pattern.permute.xlu0 0
    %986 = vperm.xlu0 %985, %v916
    %v987 = vpop.permute.xlu0 %986
    %990 = vset.pattern.permute.xlu0 0
    %991 = vperm.xlu0 %990, %v917
    %v992 = vpop.permute.xlu0 %991
    %995 = vset.pattern.permute.xlu0 0
    %996 = vperm.xlu0 %995, %v918
    %v997 = vpop.permute.xlu0 %996
    %v999 = vmul.f32 %v887, %v922
    %v1000 = vmul.f32 %v888, %v927
    %v1001 = vmul.f32 %v889, %v932
    %v1002 = vmul.f32 %v890, %v937
    %v1003 = vmul.f32 %v891, %v942
    %v1004 = vmul.f32 %v892, %v947
    %v1005 = vmul.f32 %v893, %v952
    %v1006 = vmul.f32 %v894, %v957
    %v1007 = vmul.f32 %v895, %v962
    %v1008 = vmul.f32 %v896, %v967
    %v1009 = vmul.f32 %v897, %v972
    %v1010 = vmul.f32 %v898, %v977
    %v1011 = vmul.f32 %v899, %v982
    %v1012 = vmul.f32 %v900, %v987
    %v1013 = vmul.f32 %v901, %v992
    %v1014 = vmul.f32 %v902, %v997
    %v1015 = vadd.f32 %v999, %v1000
    %v1016 = vadd.f32 %v1015, %v1001
    %v1017 = vadd.f32 %v1016, %v1002
    %v1018 = vadd.f32 %v1017, %v1003
    %v1019 = vadd.f32 %v1018, %v1004
    %v1020 = vadd.f32 %v1019, %v1005
    %v1021 = vadd.f32 %v1020, %v1006
    %v1022 = vadd.f32 %v1021, %v1007
    %v1023 = vadd.f32 %v1022, %v1008
    %v1024 = vadd.f32 %v1023, %v1009
    %v1025 = vadd.f32 %v1024, %v1010
    %v1026 = vadd.f32 %v1025, %v1011
    %v1027 = vadd.f32 %v1026, %v1012
    %v1028 = vadd.f32 %v1027, %v1013
    %v1029 = vadd.f32 %v1028, %v1014
    %v1030 = vrot.slane %v1029, 4
    %v1031 = vadd.f32 %v1029, %v1030
    %v1032 = vrot.slane %v1031, 2
    %v1033 = vadd.f32 %v1031, %v1032
    %v1034 = vrot.slane %v1033, 1
    %v1035 = vadd.f32 %v1033, %v1034
    %v1036 = vld [vmem:[#allocation2] sm:$0x1]
    %1038 = vset.pattern.permute.xlu0 0
    %1039 = vperm.xlu0 %1038, %v1036
    %v1040 = vpop.permute.xlu0 %1039
    %v1042 = vlaneseq
    %v1043 = vshrl.u32 %v1042, 7
    %v1044 = vsub.s32 0, %v1043
    %v1045 = vrot.slane %v1040, %v1044
    %v1046 = vadd.f32 %v1035, %v1045
    %v1047 = vxor.u32 %v1046, 2147483648
    %v1048 = vmul.f32 %v1047, 1.442695
    %v1049 = vpow.pop %v1048
    %v1050 = vadd.f32 %v1049, 1.0
    %v1051 = vrcp.pop %v1050
    %v1052 = vmul.f32 1.0, %v1051
    %1053 = vst [vmem:[#allocation6] sm:$0x1] %v1052
    // Predicated region
    $region46: #{tpu_custom_call.1} parent=1 // pred_check
      _
    $region47: #{tpu_custom_call.1} parent=1 // pred_check_branch
      %1055 = sbr.rel (0) target = $region49
    $region48: #{tpu_custom_call.1} parent=1 // pred_region
      %s1057 = ssub.s32 16, 16
      %1058 = vsyncadd [#allocation5], %s1057
      %s1060 = sshll.u32 [#allocation6], 4
      %s1061 = int_to_ptr.vmem [resolvable:$true] %s1060
      %1063 = dma.vmem_to_hbm [thread:$0]  %s1061, 16, %s10, [#allocation5]
    $region49: #{tpu_custom_call.1} parent=1 // pred_fallthru
      _
    // Predicated region
    $region50: #{tpu_custom_call.1} parent=1 // pred_check
      _
    $region51: #{tpu_custom_call.1} parent=1 // pred_check_branch
      %1065 = sbr.rel (0) target = $region53
    $region52: #{tpu_custom_call.1} parent=1 // pred_region
      %1066 = dma.done [#allocation5], 16
    $region53: #{tpu_custom_call.1} parent=1 // pred_fallthru
      _
    %1067 = vsyncpa [#allocation4], 1
    %1068 = vsyncpa [#allocation5], 1

</llo_original>
